<compile_context>
chip_gen: v7x
topology: tpu7x:2x2x1
jax: 0.10.0
libtpu: 0.0.40
codegen_flags: <defaults>
</compile_context>

<pallas_src>
from functools import partial

import jax
import jax.numpy as jnp
from jax import lax
from jax.experimental import pallas as pl
from jax.experimental.pallas import tpu as pltpu


_SQRT1_2 = 0.7071067811865476
_VMEM_LIMIT_BYTES = 48 * 1024 * 1024   # explicit scoped-VMEM cap (safe on v5e/v6e/v7x)


def _round_up(v, m):
    return (v + m - 1) // m * m


# ----------------------------------------------------------------------------
# small in-kernel helpers
# ----------------------------------------------------------------------------
def _sum_all(x):
    s = jnp.sum(x, axis=1, keepdims=True)
    return jnp.sum(s, axis=0, keepdims=True)           # (1, 1)


def _gn_stats(x, eps=1e-5):
    """Single-pass GroupNorm(1 group) stats over the whole (P, C) sample:
    sum and sum-of-squares together, var = E[x^2] - mu^2."""
    inv_n = 1.0 / float(x.size)
    s1 = _sum_all(x)
    s2 = _sum_all(x * x)
    mu = s1 * inv_n
    var = s2 * inv_n - mu * mu
    return mu, lax.rsqrt(var + eps)


def _erf_approx(x):
    # Abramowitz & Stegun 7.1.26; |abs err| < 1.5e-7.  exp + reciprocal go to the EUP.
    a1, a2, a3, a4, a5 = (0.254829592, -0.284496736, 1.421413741,
                          -1.453152027, 1.061405429)
    p = 0.3275911
    sgn = jnp.where(x >= 0, 1.0, -1.0).astype(x.dtype)
    ax = jnp.abs(x)
    t = pl.reciprocal(1.0 + p * ax, approx=True)
    poly = ((((a5 * t + a4) * t + a3) * t + a2) * t + a1) * t
    return sgn * (1.0 - poly * jnp.exp(-ax * ax))


def _gelu_exact(x):
    # torch.nn.GELU() default = exact (erf) GELU.
    return 0.5 * x * (1.0 + _erf_approx(x * _SQRT1_2))


# ----------------------------------------------------------------------------
# Pallas kernel: tiled matmul + bias (im2col'ed PatchEmbed convs, classifier head)
# ----------------------------------------------------------------------------
def _matmul_bias_kernel(x_ref, w_ref, b_ref, o_ref):
    o_ref[...] = (jnp.dot(x_ref[...], w_ref[...],
                          preferred_element_type=jnp.float32)
                  + b_ref[...]).astype(o_ref.dtype)


def matmul_bias(x, w, b, out_dtype=jnp.float32, tm=512):
    """x:(M,K) bf16, w:(K,N) bf16, b:(1,N) f32 -> (M,N) out_dtype.  M-tiled, weight-resident."""
    M, K = x.shape
    N = w.shape[1]
    tm = min(tm, _round_up(M, 128))

    # keep the double-buffered working set bounded (matters for big-K downsamples on v5e)
    def _footprint(t):
        return (2 * t * K * x.dtype.itemsize + 2 * K * N * w.dtype.itemsize
                + 2 * t * N * jnp.dtype(out_dtype).itemsize + 2 * N * b.dtype.itemsize)

    while tm > 128 and _footprint(tm) > 40 * 1024 * 1024:
        tm //= 2

    Mp = _round_up(M, tm)
    if Mp != M:
        x = jnp.pad(x, ((0, Mp - M), (0, 0)))
    out = pl.pallas_call(
        _matmul_bias_kernel,
        out_shape=jax.ShapeDtypeStruct((Mp, N), out_dtype),
        grid=(Mp // tm,),
        in_specs=[pl.BlockSpec((tm, K), lambda i: (i, 0)),
                  pl.BlockSpec((K, N), lambda i: (0, 0)),
                  pl.BlockSpec((1, N), lambda i: (0, 0))],
        out_specs=pl.BlockSpec((tm, N), lambda i: (i, 0)),
        compiler_params=pltpu.CompilerParams(
            dimension_semantics=("parallel",),
            vmem_limit_bytes=_VMEM_LIMIT_BYTES),
    )(x, w, b)
    return out[:M] if Mp != M else out


def conv2d_im2col(x, w, b, stride, padding):
    """Channel-last conv via im2col + Pallas matmul.  Patches are built directly in bf16
    (halves the HBM footprint of the kh*kw-expanded cols buffer) and the conv output is
    stored in bf16 (the network is HBM-bound between kernels).
    x:(B,H,W,Cin), w:(Cout,Cin,kh,kw) f32 (PyTorch layout), b:(Cout,)."""
    B, H, W, Cin = x.shape
    Cout, _, kh, kw = w.shape
    Ho = (H + 2 * padding - kh) // stride + 1
    Wo = (W + 2 * padding - kw) // stride + 1
    xp = jnp.pad(x.astype(jnp.bfloat16),
                 ((0, 0), (padding, padding), (padding, padding), (0, 0)))
    cols = []
    for di in range(kh):
        for dj in range(kw):
            cols.append(xp[:, di:di + stride * Ho:stride, dj:dj + stride * Wo:stride, :])
    cols = jnp.stack(cols, axis=3).reshape(B * Ho * Wo, kh * kw * Cin)
    wmat = jnp.transpose(w, (2, 3, 1, 0)).reshape(kh * kw * Cin, Cout)
    # zero-pad K and N up to multiples of 128: lane-dense MXU feed and stores
    K = kh * kw * Cin
    Kp, Np = _round_up(K, 128), _round_up(Cout, 128)
    cols = jnp.pad(cols, ((0, 0), (0, Kp - K)))
    wmat = jnp.pad(wmat, ((0, Kp - K), (0, Np - Cout))).astype(jnp.bfloat16)
    bias = jnp.pad(b, (0, Np - Cout)).astype(jnp.float32).reshape(1, Np)
    # TODO(synk): fully fusing im2col into the Pallas matmul (strided row DMA + in-VMEM
    # patch assembly) would remove the kh*kw-expanded HBM buffer entirely.
    out = matmul_bias(cols, wmat, bias, out_dtype=jnp.bfloat16)
    return out[:, :Cout].reshape(B, Ho, Wo, Cout)


# ----------------------------------------------------------------------------
# Pallas kernel: fused PoolFormerBlock (token mixer + MLP), channel-last (P, C)
# ----------------------------------------------------------------------------
def _block_kernel(x_ref, inv_ref, ml_ref, mr_ref,
                  g1w_ref, g1b_ref, ls1_ref,
                  g2w_ref, g2b_ref, ls2_ref,
                  w1_ref, b1_ref, w2_ref, b2_ref,
                  o_ref, pad_ref, *, W, TP):
    x = x_ref[0].astype(jnp.float32)               # (P, C) one sample, channel-last
    P, C = x.shape
    base = _round_up(W + 1, 8)                     # 8-aligned zero border (sublanes)

    # ---- token mixer: x + ls1 * (AvgPool3x3(GN1(x)) - GN1(x)), count_include_pad=False
    mu1, r1 = _gn_stats(x)
    xn = (x - mu1) * r1 * g1w_ref[...] + g1b_ref[...]
    # Borders are re-zeroed every grid step: under "parallel" megacore sharding each core
    # owns its own scratch instance, so a one-shot program_id(0)==0 init would be unsafe.
    pad_ref[0:base, :] = jnp.zeros((base, C), jnp.float32)
    pad_ref[base + P:2 * base + P, :] = jnp.zeros((base, C), jnp.float32)
    pad_ref[base:base + P, :] = xn
    # Separable 3x3 pool: vertical 3-tap sum (zero top/bottom borders) written back in
    # place, then one masked horizontal pass (column masks kill the row wrap-around),
    # scaled once by the static 1/count map.
    v = (pad_ref[base - W:base - W + P, :] + pad_ref[base:base + P, :]
         + pad_ref[base + W:base + W + P, :])
    pad_ref[base:base + P, :] = v
    m_l = jnp.broadcast_to(ml_ref[...], (P, C))    # hoisted, single broadcasts
    m_r = jnp.broadcast_to(mr_ref[...], (P, C))
    inv = jnp.broadcast_to(inv_ref[...], (P, C))
    pooled = (m_l * pad_ref[base - 1:base - 1 + P, :] + pad_ref[base:base + P, :]
              + m_r * pad_ref[base + 1:base + 1 + P, :]) * inv
    x = x + ls1_ref[...] * (pooled - xn)

    # ---- MLP: x + ls2 * (GELU(GN2(x) @ W1 + b1) @ W2 + b2)   (bf16 MXU, f32 acc)
    # Chunked over P so the (TP, hidden) f32 intermediate bounds VMEM temporaries.
    mu2, r2 = _gn_stats(x)                         # GN2 stats once; normalize per chunk
    pad_ref[base:base + P, :] = x                  # stash f32 residual (reuse pool scratch)

    def mlp_chunk(c, carry):
        r0 = c * TP
        if TP % 8 == 0:
            r0 = pl.multiple_of(r0, 8)
        res = pad_ref[pl.ds(base + r0, TP), :]
        xc = ((res - mu2) * r2 * g2w_ref[...] + g2b_ref[...]).astype(jnp.bfloat16)
        h = jnp.dot(xc, w1_ref[...], preferred_element_type=jnp.float32) + b1_ref[...]
        h = _gelu_exact(h)
        m = jnp.dot(h.astype(jnp.bfloat16), w2_ref[...],
                    preferred_element_type=jnp.float32) + b2_ref[...]
        o_ref[0, pl.ds(r0, TP), :] = (res + ls2_ref[...] * m).astype(o_ref.dtype)
        return carry

    lax.fori_loop(0, P // TP, mlp_chunk, 0)


def _pool_maps(H, W):
    """Static 1/count map + column-edge masks for 3x3 avg pool (count_include_pad=False)."""
    i = jnp.arange(H)
    j = jnp.arange(W)
    rows = jnp.where((i == 0) | (i == H - 1), 2.0, 3.0)
    cols = jnp.where((j == 0) | (j == W - 1), 2.0, 3.0)
    inv_cnt = (1.0 / (rows[:, None] * cols[None, :])).reshape(H * W, 1).astype(jnp.float32)
    m_left = jnp.tile(jnp.where(j == 0, 0.0, 1.0), H).reshape(H * W, 1).astype(jnp.float32)
    m_right = jnp.tile(jnp.where(j == W - 1, 0.0, 1.0), H).reshape(H * W, 1).astype(jnp.float32)
    return inv_cnt, m_left, m_right


def _chunk_rows(P, target=512):
    """Largest divisor of P that is <= target and a multiple of 8 (else the whole P)."""
    if P <= target:
        return P
    best = 0
    for d in range(8, target + 1, 8):
        if P % d == 0:
            best = d
    return best if best else P


def poolformer_block(xf, blk, H, W):
    """Fused PoolFormerBlock on channel-last (B, H*W, C) bf16 activations, gridded over B.
    (GroupNorm + pooling need the whole sample, so P cannot be a grid axis; the in-kernel
    P-chunking of the MLP bounds VMEM instead.)"""
    B, P, C = xf.shape
    hidden = blk['w1t'].shape[1]
    inv_cnt, m_left, m_right = _pool_maps(H, W)
    base = _round_up(W + 1, 8)
    TP = _chunk_rows(P)
    full = lambda a: pl.BlockSpec(a.shape, lambda b: (0,) * a.ndim)
    return pl.pallas_call(
        partial(_block_kernel, W=W, TP=TP),
        out_shape=jax.ShapeDtypeStruct((B, P, C), jnp.bfloat16),
        grid=(B,),
        in_specs=[pl.BlockSpec((1, P, C), lambda b: (b, 0, 0)),
                  full(inv_cnt), full(m_left), full(m_right),
                  full(blk['gn1w']), full(blk['gn1b']), full(blk['ls1']),
                  full(blk['gn2w']), full(blk['gn2b']), full(blk['ls2']),
                  pl.BlockSpec((C, hidden), lambda b: (0, 0)), full(blk['b1']),
                  pl.BlockSpec((hidden, C), lambda b: (0, 0)), full(blk['b2'])],
        out_specs=pl.BlockSpec((1, P, C), lambda b: (b, 0, 0)),
        scratch_shapes=[pltpu.VMEM((P + 2 * base, C), jnp.float32)],
        compiler_params=pltpu.CompilerParams(
            dimension_semantics=("parallel",),
            vmem_limit_bytes=_VMEM_LIMIT_BYTES),
    )(xf, inv_cnt, m_left, m_right,
      blk['gn1w'], blk['gn1b'], blk['ls1'],
      blk['gn2w'], blk['gn2b'], blk['ls2'],
      blk['w1t'].astype(jnp.bfloat16), blk['b1'],
      blk['w2t'].astype(jnp.bfloat16), blk['b2'])


# ----------------------------------------------------------------------------
# Pallas kernel: final GroupNorm(1) -> global average pool; then one batched head matmul
# ----------------------------------------------------------------------------
def _gap_kernel(x_ref, gw_ref, gb_ref, o_ref):
    x = x_ref[0].astype(jnp.float32)               # (P, C) one sample
    mu, r = _gn_stats(x)
    xn = (x - mu) * r * gw_ref[...] + gb_ref[...]
    o_ref[0] = jnp.sum(xn, axis=0, keepdims=True) * (1.0 / x.shape[0])


def poolformer_head(xf, norm_w, norm_b, head_w, head_b):
    B, P, C = xf.shape
    full = lambda a: pl.BlockSpec(a.shape, lambda b: (0,) * a.ndim)
    pooled = pl.pallas_call(
        _gap_kernel,
        out_shape=jax.ShapeDtypeStruct((B, 1, C), jnp.float32),
        grid=(B,),
        in_specs=[pl.BlockSpec((1, P, C), lambda b: (b, 0, 0)),
                  full(norm_w), full(norm_b)],
        out_specs=pl.BlockSpec((1, 1, C), lambda b: (b, 0, 0)),
        compiler_params=pltpu.CompilerParams(
            dimension_semantics=("parallel",),
            vmem_limit_bytes=_VMEM_LIMIT_BYTES),
    )(xf, norm_w, norm_b).reshape(B, C)
    # Batched classifier: one well-shaped (B,C)@(C,N) MXU matmul instead of per-sample matvecs.
    N = head_w.shape[1]
    Kp, Np = _round_up(C, 128), _round_up(N, 128)
    xb = jnp.pad(pooled, ((0, 0), (0, Kp - C))).astype(jnp.bfloat16)
    wb = jnp.pad(head_w, ((0, Kp - C), (0, Np - N))).astype(jnp.bfloat16)
    bb = jnp.pad(head_b.reshape(1, -1), ((0, 0), (0, Np - N))).astype(jnp.float32)
    return matmul_bias(xb, wb, bb, out_dtype=jnp.float32)[:, :N]


# ----------------------------------------------------------------------------
# parameters + full forward
# ----------------------------------------------------------------------------
def make_params(key, *, layers, embed_dims, mlp_ratios, in_chans, num_classes,
                in_patch_size=7, in_stride=4, in_pad=2,
                down_patch_size=3, down_stride=2, down_pad=1,
                layer_scale_init_value=1e-5):
    keys = iter(jax.random.split(key, 128))
    nrm = lambda shape, std=0.02: (std * jax.random.normal(next(keys), shape)).astype(jnp.float32)

    params = {'stem': dict(w=nrm((embed_dims[0], in_chans, in_patch_size, in_patch_size)),
                           b=jnp.zeros((embed_dims[0],), jnp.float32),
                           stride=in_stride, pad=in_pad)}
    stages = []
    for i in range(len(layers)):
        d = embed_dims[i]
        hidden = int(d * mlp_ratios[i])
        blocks = []
        for _ in range(layers[i]):
            blocks.append(dict(
                gn1w=jnp.ones((1, d), jnp.float32),
                gn1b=jnp.zeros((1, d), jnp.float32),
                ls1=jnp.full((1, d), layer_scale_init_value, jnp.float32),
                gn2w=jnp.ones((1, d), jnp.float32),
                gn2b=jnp.zeros((1, d), jnp.float32),
                ls2=jnp.full((1, d), layer_scale_init_value, jnp.float32),
                w1t=nrm((d, hidden)), b1=jnp.zeros((1, hidden), jnp.float32),
                w2t=nrm((hidden, d)), b2=jnp.zeros((1, d), jnp.float32)))
        down = None
        if i < len(layers) - 1:
            down = dict(w=nrm((embed_dims[i + 1], d, down_patch_size, down_patch_size)),
                        b=jnp.zeros((embed_dims[i + 1],), jnp.float32),
                        stride=down_stride, pad=down_pad)
        stages.append(dict(blocks=blocks, down=down))
    params['stages'] = stages
    d_last = embed_dims[len(layers) - 1]
    params['norm_w'] = jnp.ones((1, d_last), jnp.float32)
    params['norm_b'] = jnp.zeros((1, d_last), jnp.float32)
    params['head_w'] = nrm((d_last, num_classes))
    params['head_b'] = jnp.zeros((1, num_classes), jnp.float32)
    return params


def adv_poolformer_forward(x, params):
    """AdvPoolFormer.forward(x) in eval mode with NoOpAttacker and labels=None -> logits."""
    x = jnp.transpose(x, (0, 2, 3, 1))             # NCHW -> NHWC once, channel-last everywhere
    st = params['stem']
    x = conv2d_im2col(x, st['w'], st['b'], st['stride'], st['pad'])      # bf16 activations
    for stage in params['stages']:
        B, H, W, C = x.shape
        xf = x.reshape(B, H * W, C)                # free reshape (metadata only)
        for blk in stage['blocks']:
            xf = poolformer_block(xf, blk, H, W)
        x = xf.reshape(B, H, W, C)
        if stage['down'] is not None:
            dn = stage['down']
            x = conv2d_im2col(x, dn['w'], dn['b'], dn['stride'], dn['pad'])
    B, H, W, C = x.shape
    return poolformer_head(x.reshape(B, H * W, C), params['norm_w'], params['norm_b'],
                           params['head_w'], params['head_b'])


# ----------------------------------------------------------------------------
# pure-JAX f32 reference (sanity check only)
# ----------------------------------------------------------------------------
def _ref_forward(x, params):
    x = jnp.transpose(x, (0, 2, 3, 1))             # NHWC

    def gn(x, w, b):
        mu = x.mean(axis=(1, 2, 3), keepdims=True)
        var = ((x - mu) ** 2).mean(axis=(1, 2, 3), keepdims=True)
        return (x - mu) / jnp.sqrt(var + 1e-5) * w.reshape(1, 1, 1, -1) + b.reshape(1, 1, 1, -1)

    def conv(x, w, b, s, p):
        out = lax.conv_general_dilated(x, w, (s, s), [(p, p), (p, p)],
                                       dimension_numbers=('NHWC', 'OIHW', 'NHWC'))
        return out + b.reshape(1, 1, 1, -1)

    def pool(x):
        B, H, W, C = x.shape
        xs = jnp.pad(x, ((0, 0), (1, 1), (1, 1), (0, 0)))
        ons = jnp.pad(jnp.ones((1, H, W, 1)), ((0, 0), (1, 1), (1, 1), (0, 0)))
        acc = sum(xs[:, 1 + a:1 + a + H, 1 + b_:1 + b_ + W, :] for a in (-1, 0, 1) for b_ in (-1, 0, 1))
        cnt = sum(ons[:, 1 + a:1 + a + H, 1 + b_:1 + b_ + W, :] for a in (-1, 0, 1) for b_ in (-1, 0, 1))
        return acc / cnt

    st = params['stem']
    x = conv(x, st['w'], st['b'], st['stride'], st['pad'])
    for stage in params['stages']:
        for blk in stage['blocks']:
            xn = gn(x, blk['gn1w'].reshape(-1), blk['gn1b'].reshape(-1))
            x = x + blk['ls1'].reshape(1, 1, 1, -1) * (pool(xn) - xn)
            xn2 = gn(x, blk['gn2w'].reshape(-1), blk['gn2b'].reshape(-1))
            h = jnp.einsum('bhwc,cd->bhwd', xn2, blk['w1t']) + blk['b1'].reshape(1, 1, 1, -1)
            h = jax.nn.gelu(h, approximate=False)
            m = jnp.einsum('bhwd,dc->bhwc', h, blk['w2t']) + blk['b2'].reshape(1, 1, 1, -1)
            x = x + blk['ls2'].reshape(1, 1, 1, -1) * m
        if stage['down'] is not None:
            dn = stage['down']
            x = conv(x, dn['w'], dn['b'], dn['stride'], dn['pad'])
    xn = gn(x, params['norm_w'].reshape(-1), params['norm_b'].reshape(-1))
    pooled = xn.mean(axis=(1, 2))
    return pooled @ params['head_w'] + params['head_b']


if __name__ == "__main__":
    key = jax.random.PRNGKey(0)
    kx, kp = jax.random.split(key)
    # small config: 2 stages, 1 block each, dims (8, 16), mlp ratio 4, 10 classes
    x = jax.random.normal(kx, (2, 3, 32, 32), dtype=jnp.float32)
    params = make_params(kp, layers=[1, 1], embed_dims=(8, 16), mlp_ratios=(4, 4),
                         in_chans=3, num_classes=10)

    out = adv_poolformer_forward(x, params)
    out = jax.block_until_ready(out)
    assert out.shape == (2, 10), out.shape

    ref = _ref_forward(x, params)
    if not jnp.allclose(out, ref, atol=2e-2, rtol=2e-2):
        raise AssertionError(f"mismatch: max abs diff {jnp.max(jnp.abs(out - ref))}")

    print("KERNEL_OK")
</pallas_src>

<mosaic_0001>
module attributes {stable_mosaic.version = 11 : i64} {
  func.func @_matmul_bias_kernel(%arg0: i32, %arg1: memref<128x256xbf16, #tpu.memory_space<vmem>>, %arg2: memref<256x128xbf16, #tpu.memory_space<vmem>>, %arg3: memref<1x128xf32, #tpu.memory_space<vmem>>, %arg4: memref<128x128xbf16, #tpu.memory_space<vmem>>) attributes {dimension_semantics = [#tpu.dimension_semantics<parallel>], iteration_bounds = array<i64: 1>, scalar_prefetch = 0 : i64, scratch_operands = 0 : i64, tpu.core_type = #tpu.core_type<tc>, window_params = [{transform_indices = @transform_0, window_bounds = array<i64: 128, 256>}, {pipeline_mode = #tpu.pipeline_mode<synchronous>, transform_indices = @transform_1, window_bounds = array<i64: 256, 128>}, {pipeline_mode = #tpu.pipeline_mode<synchronous>, transform_indices = @transform_2, window_bounds = array<i64: 1, 128>}, {transform_indices = @transform_3, window_bounds = array<i64: 128, 128>}]} {
    %c0 = arith.constant 0 : index
    %c0_0 = arith.constant 0 : index
    %0 = vector.load %arg1[%c0, %c0_0] : memref<128x256xbf16, #tpu.memory_space<vmem>>, vector<128x256xbf16>
    %c0_1 = arith.constant 0 : index
    %c0_2 = arith.constant 0 : index
    %1 = vector.load %arg2[%c0_1, %c0_2] : memref<256x128xbf16, #tpu.memory_space<vmem>>, vector<256x128xbf16>
    %cst = arith.constant dense<0.000000e+00> : vector<128x128xf32>
    %2 = tpu.matmul %0, %1, %cst {dimension_numbers = #tpu.dot_dimension_numbers<[1], [0], [0], [1], [0, 0, 1, 1], [], []>} : vector<128x256xbf16>, vector<256x128xbf16>, vector<128x128xf32> -> vector<128x128xf32>
    %c0_3 = arith.constant 0 : index
    %c0_4 = arith.constant 0 : index
    %3 = vector.load %arg3[%c0_3, %c0_4] : memref<1x128xf32, #tpu.memory_space<vmem>>, vector<1x128xf32>
    %4 = vector.broadcast %3 : vector<1x128xf32> to vector<128x128xf32>
    %5 = arith.addf %2, %4 : vector<128x128xf32>
    %6 = arith.truncf %5 : vector<128x128xf32> to vector<128x128xbf16>
    %c0_5 = arith.constant 0 : index
    %c0_6 = arith.constant 0 : index
    %7 = vector.load %arg4[%c0_5, %c0_6] : memref<128x128xbf16, #tpu.memory_space<vmem>>, vector<128x128xbf16>
    tpu.vector_store %arg4[%c0_5, %c0_6], %6 {strides = array<i32>} : memref<128x128xbf16, #tpu.memory_space<vmem>>, vector<128x128xbf16>,
    return
  }
  func.func @transform_0(%arg0: i32) -> (i32, i32) {
    %c0_i32 = arith.constant 0 : i32
    %c0_i32_0 = arith.constant 0 : i32
    return %arg0, %c0_i32 : i32, i32
  }
  func.func @transform_1(%arg0: i32) -> (i32, i32) {
    %c0_i32 = arith.constant 0 : i32
    %c0_i32_0 = arith.constant 0 : i32
    %c0_i32_1 = arith.constant 0 : i32
    return %c0_i32, %c0_i32_0 : i32, i32
  }
  func.func @transform_2(%arg0: i32) -> (i32, i32) {
    %c0_i32 = arith.constant 0 : i32
    %c0_i32_0 = arith.constant 0 : i32
    %c0_i32_1 = arith.constant 0 : i32
    return %c0_i32, %c0_i32_0 : i32, i32
  }
  func.func @transform_3(%arg0: i32) -> (i32, i32) {
    %c0_i32 = arith.constant 0 : i32
    %c0_i32_0 = arith.constant 0 : i32
    return %arg0, %c0_i32 : i32, i32
  }
}

</mosaic_0001>

<llo_original>
// kernel: tpu_custom_call.1
$region0: #{tpu_custom_call.1}
  #allocation0 [shape = 'u32[]', space=smem, size = 0x4, offset = 0x4, fixed_abs, tag = 'smem constant byte address 0x4 - core index']
  #allocation1 [shape = 'u32[144,128]{1,0:T(1,128)}', space=vmem, size = 0x12000, scoped, tag = 'internal scratch']
  %s0 = inlined_call_operand.hbm [shape: bf16[128,256], index: 0, kind: input, shape index: {}]
  %s1 = inlined_call_operand.hbm [shape: bf16[256,128], index: 1, kind: input, shape index: {}]
  %s2 = inlined_call_operand.vmem [shape: f32[1,128], index: 2, kind: input, shape index: {}]
  %s3 = inlined_call_operand.hbm [shape: bf16[128,128], index: 3, kind: output, shape index: {}]
  %s4 = sld [smem:[#allocation0]]
  $region30: #{tpu_custom_call.1} parent=0
    _
  %s6 = ssub.s32 1, %s4
  %s7 = scalar_select 0, %s6, %s4
  $region1: #{tpu_custom_call.1} parent=0
    #allocation2 [shape = 'u8[65536]{0}', space=vmem, size = 0x10000, scoped, tag = 'input window, operand 0, single buffered']
    #allocation3 [shape = 's32[1]{0}', space=sflag, size = 0x4, scoped, tag = 'scoped memory for tpu_custom_call.1']
    #allocation4 [shape = 's32[1]{0}', space=sflag, size = 0x4, scoped, tag = 'scoped memory for tpu_custom_call.1']
    #allocation5 [shape = 'u8[65536]{0}', space=vmem, size = 0x10000, scoped, tag = 'input window, operand 1, single buffered']
    #allocation6 [shape = 's32[1]{0}', space=sflag, size = 0x4, scoped, tag = 'scoped memory for tpu_custom_call.1']
    #allocation7 [shape = 'u8[32768]{0}', space=vmem, size = 0x8000, scoped, tag = 'output window, operand 0, single buffered']
    %8 = vsyncpa [#allocation3], 0
    %9 = vsyncpa [#allocation6], 0
    %10 = vsyncpa [#allocation4], 0
    // Predicated region
    $region2: #{tpu_custom_call.1} parent=1 // pred_check
      _
    $region3: #{tpu_custom_call.1} parent=1 // pred_check_branch
      %12 = sbr.rel (0) target = $region5
    $region4: #{tpu_custom_call.1} parent=1 // pred_region
      %s14 = ssub.s32 2048, 2048
      %15 = vsyncadd [#allocation3], %s14
      %s16 = sshll.u32 [#allocation2], 4
      %s17 = int_to_ptr.vmem [resolvable:$true] %s16
      %22 = dma.hbm_to_vmem [thread:$0]  %s0, 2048, %s17, [#allocation3], 128, 128, 8
    $region5: #{tpu_custom_call.1} parent=1 // pred_fallthru
      _
    // Predicated region
    $region6: #{tpu_custom_call.1} parent=1 // pred_check
      _
    $region7: #{tpu_custom_call.1} parent=1 // pred_check_branch
      %24 = sbr.rel (0) target = $region9
    $region8: #{tpu_custom_call.1} parent=1 // pred_region
      %s26 = ssub.s32 2048, 2048
      %27 = vsyncadd [#allocation6], %s26
      %s28 = sshll.u32 [#allocation5], 4
      %s29 = int_to_ptr.vmem [resolvable:$true] %s28
      %34 = dma.hbm_to_vmem [thread:$0]  %s1, 2048, %s29, [#allocation6], 64, 64, 4
    $region9: #{tpu_custom_call.1} parent=1 // pred_fallthru
      _
    // Predicated region
    $region10: #{tpu_custom_call.1} parent=1 // pred_check
      _
    $region11: #{tpu_custom_call.1} parent=1 // pred_check_branch
      %36 = sbr.rel (0) target = $region13
    $region12: #{tpu_custom_call.1} parent=1 // pred_region
      _
    $region13: #{tpu_custom_call.1} parent=1 // pred_fallthru
      _
    // Predicated region
    $region14: #{tpu_custom_call.1} parent=1 // pred_check
      _
    $region15: #{tpu_custom_call.1} parent=1 // pred_check_branch
      %38 = sbr.rel (0) target = $region17
    $region16: #{tpu_custom_call.1} parent=1 // pred_region
      %39 = dma.done [#allocation3], 2048
    $region17: #{tpu_custom_call.1} parent=1 // pred_fallthru
      _
    // Predicated region
    $region18: #{tpu_custom_call.1} parent=1 // pred_check
      _
    $region19: #{tpu_custom_call.1} parent=1 // pred_check_branch
      %41 = sbr.rel (0) target = $region21
    $region20: #{tpu_custom_call.1} parent=1 // pred_region
      %42 = dma.done [#allocation6], 2048
    $region21: #{tpu_custom_call.1} parent=1 // pred_fallthru
      _
    %v44 = vld [vmem:[#allocation2] sm:$0xff]
    %v45 = vld [vmem:[#allocation2 + $0x8] sm:$0xff]
    %v46 = vld [vmem:[#allocation2 + $0x10] sm:$0xff]
    %v47 = vld [vmem:[#allocation2 + $0x18] sm:$0xff]
    %v48 = vld [vmem:[#allocation2 + $0x20] sm:$0xff]
    %v49 = vld [vmem:[#allocation2 + $0x28] sm:$0xff]
    %v50 = vld [vmem:[#allocation2 + $0x30] sm:$0xff]
    %v51 = vld [vmem:[#allocation2 + $0x38] sm:$0xff]
    %v52 = vld [vmem:[#allocation2 + $0x40] sm:$0xff]
    %v53 = vld [vmem:[#allocation2 + $0x48] sm:$0xff]
    %v54 = vld [vmem:[#allocation2 + $0x50] sm:$0xff]
    %v55 = vld [vmem:[#allocation2 + $0x58] sm:$0xff]
    %v56 = vld [vmem:[#allocation2 + $0x60] sm:$0xff]
    %v57 = vld [vmem:[#allocation2 + $0x68] sm:$0xff]
    %v58 = vld [vmem:[#allocation2 + $0x70] sm:$0xff]
    %v59 = vld [vmem:[#allocation2 + $0x78] sm:$0xff]
    %v60 = vld [vmem:[#allocation5] sm:$0xf]
    %v61 = vld [vmem:[#allocation5 + $0x4] sm:$0xf]
    %v62 = vld [vmem:[#allocation5 + $0x8] sm:$0xf]
    %v63 = vld [vmem:[#allocation5 + $0xc] sm:$0xf]
    %v64 = vld [vmem:[#allocation5 + $0x10] sm:$0xf]
    %v65 = vld [vmem:[#allocation5 + $0x14] sm:$0xf]
    %v66 = vld [vmem:[#allocation5 + $0x18] sm:$0xf]
    %v67 = vld [vmem:[#allocation5 + $0x1c] sm:$0xf]
    %v68 = vld [vmem:[#allocation5 + $0x20] sm:$0xf]
    %v69 = vld [vmem:[#allocation5 + $0x24] sm:$0xf]
    %v70 = vld [vmem:[#allocation5 + $0x28] sm:$0xf]
    %v71 = vld [vmem:[#allocation5 + $0x2c] sm:$0xf]
    %v72 = vld [vmem:[#allocation5 + $0x30] sm:$0xf]
    %v73 = vld [vmem:[#allocation5 + $0x34] sm:$0xf]
    %v74 = vld [vmem:[#allocation5 + $0x38] sm:$0xf]
    %v75 = vld [vmem:[#allocation5 + $0x3c] sm:$0xf]
    %v76 = vld [vmem:[#allocation5 + $0x40] sm:$0xf]
    %v77 = vld [vmem:[#allocation5 + $0x44] sm:$0xf]
    %v78 = vld [vmem:[#allocation5 + $0x48] sm:$0xf]
    %v79 = vld [vmem:[#allocation5 + $0x4c] sm:$0xf]
    %v80 = vld [vmem:[#allocation5 + $0x50] sm:$0xf]
    %v81 = vld [vmem:[#allocation5 + $0x54] sm:$0xf]
    %v82 = vld [vmem:[#allocation5 + $0x58] sm:$0xf]
    %v83 = vld [vmem:[#allocation5 + $0x5c] sm:$0xf]
    %v84 = vld [vmem:[#allocation5 + $0x60] sm:$0xf]
    %v85 = vld [vmem:[#allocation5 + $0x64] sm:$0xf]
    %v86 = vld [vmem:[#allocation5 + $0x68] sm:$0xf]
    %v87 = vld [vmem:[#allocation5 + $0x6c] sm:$0xf]
    %v88 = vld [vmem:[#allocation5 + $0x70] sm:$0xf]
    %v89 = vld [vmem:[#allocation5 + $0x74] sm:$0xf]
    %v90 = vld [vmem:[#allocation5 + $0x78] sm:$0xf]
    %v91 = vld [vmem:[#allocation5 + $0x7c] sm:$0xf]
    %v92 = vld [vmem:[%s2] sm:$0x1]
    %v94 = vlaneseq
    %v95 = vshrl.u32 %v94, 7
    %v96 = vsub.s32 0, %v95
    %v97 = vrot.slane %v92, %v96
    %v115 = vunpack.c.l.b16 %v44
    %v116 = vunpack.c.h.b16 %v44
    %v117 = vunpack.c.l.b16 %v45
    %v118 = vunpack.c.h.b16 %v45
    %v119 = vunpack.c.l.b16 %v46
    %v120 = vunpack.c.h.b16 %v46
    %v121 = vunpack.c.l.b16 %v47
    %v122 = vunpack.c.h.b16 %v47
    %v123 = vunpack.c.l.b16 %v48
    %v124 = vunpack.c.h.b16 %v48
    %v125 = vunpack.c.l.b16 %v49
    %v126 = vunpack.c.h.b16 %v49
    %v127 = vunpack.c.l.b16 %v50
    %v128 = vunpack.c.h.b16 %v50
    %v129 = vunpack.c.l.b16 %v51
    %v130 = vunpack.c.h.b16 %v51
    %v131 = vunpack.c.l.b16 %v52
    %v132 = vunpack.c.h.b16 %v52
    %v133 = vunpack.c.l.b16 %v53
    %v134 = vunpack.c.h.b16 %v53
    %v135 = vunpack.c.l.b16 %v54
    %v136 = vunpack.c.h.b16 %v54
    %v137 = vunpack.c.l.b16 %v55
    %v138 = vunpack.c.h.b16 %v55
    %v139 = vunpack.c.l.b16 %v56
    %v140 = vunpack.c.h.b16 %v56
    %v141 = vunpack.c.l.b16 %v57
    %v142 = vunpack.c.h.b16 %v57
    %v143 = vunpack.c.l.b16 %v58
    %v144 = vunpack.c.h.b16 %v58
    %v145 = vunpack.c.l.b16 %v59
    %v146 = vunpack.c.h.b16 %v59
    %v147 = vpack.c.b16 %v117, %v115
    %v148 = vpack.c.b16 %v118, %v116
    %v149 = vpack.c.b16 %v121, %v119
    %v150 = vpack.c.b16 %v122, %v120
    %v151 = vpack.c.b16 %v125, %v123
    %v152 = vpack.c.b16 %v126, %v124
    %v153 = vpack.c.b16 %v129, %v127
    %v154 = vpack.c.b16 %v130, %v128
    %v155 = vpack.c.b16 %v133, %v131
    %v156 = vpack.c.b16 %v134, %v132
    %v157 = vpack.c.b16 %v137, %v135
    %v158 = vpack.c.b16 %v138, %v136
    %v159 = vpack.c.b16 %v141, %v139
    %v160 = vpack.c.b16 %v142, %v140
    %v161 = vpack.c.b16 %v145, %v143
    %v162 = vpack.c.b16 %v146, %v144
    %v211 = vunpack.c.l.b16 %v60
    %v212 = vunpack.c.l.b16 %v61
    %v213 = vunpack.c.l.b16 %v62
    %v214 = vunpack.c.l.b16 %v63
    %v215 = vunpack.c.l.b16 %v64
    %v216 = vunpack.c.l.b16 %v65
    %v217 = vunpack.c.l.b16 %v66
    %v218 = vunpack.c.l.b16 %v67
    %v219 = vunpack.c.l.b16 %v68
    %v220 = vunpack.c.l.b16 %v69
    %v221 = vunpack.c.l.b16 %v70
    %v222 = vunpack.c.l.b16 %v71
    %v223 = vunpack.c.l.b16 %v72
    %v224 = vunpack.c.l.b16 %v73
    %v225 = vunpack.c.l.b16 %v74
    %v226 = vunpack.c.l.b16 %v75
    %v227 = vunpack.c.l.b16 %v76
    %v228 = vunpack.c.l.b16 %v77
    %v229 = vunpack.c.l.b16 %v78
    %v230 = vunpack.c.l.b16 %v79
    %v231 = vunpack.c.l.b16 %v80
    %v232 = vunpack.c.l.b16 %v81
    %v233 = vunpack.c.l.b16 %v82
    %v234 = vunpack.c.l.b16 %v83
    %v235 = vunpack.c.l.b16 %v84
    %v236 = vunpack.c.l.b16 %v85
    %v237 = vunpack.c.l.b16 %v86
    %v238 = vunpack.c.l.b16 %v87
    %v239 = vunpack.c.l.b16 %v88
    %v240 = vunpack.c.l.b16 %v89
    %v241 = vunpack.c.l.b16 %v90
    %v242 = vunpack.c.l.b16 %v91
    %v243 = vpack.c.b16 %v212, %v211
    %v244 = vpack.c.b16 %v214, %v213
    %v245 = vpack.c.b16 %v216, %v215
    %v246 = vpack.c.b16 %v218, %v217
    %v247 = vpack.c.b16 %v220, %v219
    %v248 = vpack.c.b16 %v222, %v221
    %v249 = vpack.c.b16 %v224, %v223
    %v250 = vpack.c.b16 %v226, %v225
    %v251 = vpack.c.b16 %v228, %v227
    %v252 = vpack.c.b16 %v230, %v229
    %v253 = vpack.c.b16 %v232, %v231
    %v254 = vpack.c.b16 %v234, %v233
    %v255 = vpack.c.b16 %v236, %v235
    %v256 = vpack.c.b16 %v238, %v237
    %v257 = vpack.c.b16 %v240, %v239
    %v258 = vpack.c.b16 %v242, %v241
    %275 = vmatprep.subr.bf16.mxu0 0
    %276 = vmatpush1.bf16.msra.mxu0 %v243
    %277 = vmatprep.subr.bf16.mxu0 0
    %278 = vmatpush1.bf16.msra.mxu0 %v244
    %279 = vmatprep.subr.bf16.mxu0 0
    %280 = vmatpush1.bf16.msra.mxu0 %v245
    %281 = vmatprep.subr.bf16.mxu0 0
    %282 = vmatpush1.bf16.msra.mxu0 %v246
    %283 = vmatprep.subr.bf16.mxu0 0
    %284 = vmatpush1.bf16.msra.mxu0 %v247
    %285 = vmatprep.subr.bf16.mxu0 0
    %286 = vmatpush1.bf16.msra.mxu0 %v248
    %287 = vmatprep.subr.bf16.mxu0 0
    %288 = vmatpush1.bf16.msra.mxu0 %v249
    %289 = vmatprep.subr.bf16.mxu0 0
    %290 = vmatpush1.bf16.msra.mxu0 %v250
    %291 = vmatprep.subr.bf16.mxu0 0
    %292 = vmatpush1.bf16.msra.mxu0 %v251
    %293 = vmatprep.subr.bf16.mxu0 0
    %294 = vmatpush1.bf16.msra.mxu0 %v252
    %295 = vmatprep.subr.bf16.mxu0 0
    %296 = vmatpush1.bf16.msra.mxu0 %v253
    %297 = vmatprep.subr.bf16.mxu0 0
    %298 = vmatpush1.bf16.msra.mxu0 %v254
    %299 = vmatprep.subr.bf16.mxu0 0
    %300 = vmatpush1.bf16.msra.mxu0 %v255
    %301 = vmatprep.subr.bf16.mxu0 0
    %302 = vmatpush1.bf16.msra.mxu0 %v256
    %303 = vmatprep.subr.bf16.mxu0 0
    %304 = vmatpush1.bf16.msra.mxu0 %v257
    %305 = vmatprep.subr.bf16.mxu0 0
    %306 = vmatpush1.bf16.msra.mxu0 %v258
    %307 = vmatprep.mubr.bf16.mxu0 %v148
    %308 = vmatmul.mubr.bf16.gmra.mrb[0].mxu0 %v147
    %v309 = vpop.f32.mrb[0].mxu0
    %v310 = vadd.f32 %v97, %v309
    %v311 = vpop.f32.mrb[0].mxu0
    %v312 = vpop.f32.mrb[0].mxu0
    %v313 = vadd.f32 %v97, %v312
    %v314 = vpop.f32.mrb[0].mxu0
    %315 = vmatprep.mubr.bf16.mxu0 %v150
    %316 = vmatmul.mubr.bf16.gmra.mrb[0].mxu0 %v149
    %v317 = vpop.f32.mrb[0].mxu0
    %v318 = vadd.f32 %v97, %v317
    %v319 = vpop.f32.mrb[0].mxu0
    %v320 = vpop.f32.mrb[0].mxu0
    %v321 = vadd.f32 %v97, %v320
    %v322 = vpop.f32.mrb[0].mxu0
    %323 = vmatprep.mubr.bf16.mxu0 %v152
    %324 = vmatmul.mubr.bf16.gmra.mrb[0].mxu0 %v151
    %v325 = vpop.f32.mrb[0].mxu0
    %v326 = vadd.f32 %v97, %v325
    %v327 = vpop.f32.mrb[0].mxu0
    %v328 = vpop.f32.mrb[0].mxu0
    %v329 = vadd.f32 %v97, %v328
    %v330 = vpop.f32.mrb[0].mxu0
    %331 = vmatprep.mubr.bf16.mxu0 %v154
    %332 = vmatmul.mubr.bf16.gmra.mrb[0].mxu0 %v153
    %v333 = vpop.f32.mrb[0].mxu0
    %v334 = vadd.f32 %v97, %v333
    %v335 = vpop.f32.mrb[0].mxu0
    %v336 = vpop.f32.mrb[0].mxu0
    %v337 = vadd.f32 %v97, %v336
    %v338 = vpop.f32.mrb[0].mxu0
    %339 = vmatprep.mubr.bf16.mxu0 %v156
    %340 = vmatmul.mubr.bf16.gmra.mrb[0].mxu0 %v155
    %v341 = vpop.f32.mrb[0].mxu0
    %v342 = vadd.f32 %v97, %v341
    %v343 = vpop.f32.mrb[0].mxu0
    %v344 = vpop.f32.mrb[0].mxu0
    %v345 = vadd.f32 %v97, %v344
    %v346 = vpop.f32.mrb[0].mxu0
    %347 = vmatprep.mubr.bf16.mxu0 %v158
    %348 = vmatmul.mubr.bf16.gmra.mrb[0].mxu0 %v157
    %v349 = vpop.f32.mrb[0].mxu0
    %v350 = vadd.f32 %v97, %v349
    %v351 = vpop.f32.mrb[0].mxu0
    %v352 = vpop.f32.mrb[0].mxu0
    %v353 = vadd.f32 %v97, %v352
    %v354 = vpop.f32.mrb[0].mxu0
    %355 = vmatprep.mubr.bf16.mxu0 %v160
    %356 = vmatmul.mubr.bf16.gmra.mrb[0].mxu0 %v159
    %v357 = vpop.f32.mrb[0].mxu0
    %v358 = vadd.f32 %v97, %v357
    %v359 = vpop.f32.mrb[0].mxu0
    %v360 = vpop.f32.mrb[0].mxu0
    %v361 = vadd.f32 %v97, %v360
    %v362 = vpop.f32.mrb[0].mxu0
    %363 = vmatprep.mubr.bf16.mxu0 %v162
    %364 = vmatmul.mubr.bf16.gmra.mrb[0].mxu0 %v161
    %v365 = vpop.f32.mrb[0].mxu0
    %v366 = vadd.f32 %v97, %v365
    %v367 = vpop.f32.mrb[0].mxu0
    %v368 = vpop.f32.mrb[0].mxu0
    %v369 = vadd.f32 %v97, %v368
    %v370 = vpop.f32.mrb[0].mxu0
    %371 = vdwg.mxu0
    %v372 = vpack.c.bf16 %v313, %v310
    %v373 = vpack.c.bf16 %v321, %v318
    %v374 = vpack.c.bf16 %v329, %v326
    %v375 = vpack.c.bf16 %v337, %v334
    %v376 = vpack.c.bf16 %v345, %v342
    %v377 = vpack.c.bf16 %v353, %v350
    %v378 = vpack.c.bf16 %v361, %v358
    %v379 = vpack.c.bf16 %v369, %v366
    %v388 = vunpack.c.l.b16 %v372
    %v389 = vunpack.c.h.b16 %v372
    %v390 = vunpack.c.l.b16 %v373
    %v391 = vunpack.c.h.b16 %v373
    %v392 = vunpack.c.l.b16 %v374
    %v393 = vunpack.c.h.b16 %v374
    %v394 = vunpack.c.l.b16 %v375
    %v395 = vunpack.c.h.b16 %v375
    %v396 = vunpack.c.l.b16 %v376
    %v397 = vunpack.c.h.b16 %v376
    %v398 = vunpack.c.l.b16 %v377
    %v399 = vunpack.c.h.b16 %v377
    %v400 = vunpack.c.l.b16 %v378
    %v401 = vunpack.c.h.b16 %v378
    %v402 = vunpack.c.l.b16 %v379
    %v403 = vunpack.c.h.b16 %v379
    %v404 = vpack.c.b16 %v388, %v388
    %v405 = vpack.c.b16 %v389, %v389
    %v406 = vpack.c.b16 %v390, %v390
    %v407 = vpack.c.b16 %v391, %v391
    %v408 = vpack.c.b16 %v392, %v392
    %v409 = vpack.c.b16 %v393, %v393
    %v410 = vpack.c.b16 %v394, %v394
    %v411 = vpack.c.b16 %v395, %v395
    %v412 = vpack.c.b16 %v396, %v396
    %v413 = vpack.c.b16 %v397, %v397
    %v414 = vpack.c.b16 %v398, %v398
    %v415 = vpack.c.b16 %v399, %v399
    %v416 = vpack.c.b16 %v400, %v400
    %v417 = vpack.c.b16 %v401, %v401
    %v418 = vpack.c.b16 %v402, %v402
    %v419 = vpack.c.b16 %v403, %v403
    %436 = vst [vmem:[#allocation7] sm:$0xf] %v404
    %437 = vst [vmem:[#allocation7 + $0x4] sm:$0xf] %v405
    %438 = vst [vmem:[#allocation7 + $0x8] sm:$0xf] %v406
    %439 = vst [vmem:[#allocation7 + $0xc] sm:$0xf] %v407
    %440 = vst [vmem:[#allocation7 + $0x10] sm:$0xf] %v408
    %441 = vst [vmem:[#allocation7 + $0x14] sm:$0xf] %v409
    %442 = vst [vmem:[#allocation7 + $0x18] sm:$0xf] %v410
    %443 = vst [vmem:[#allocation7 + $0x1c] sm:$0xf] %v411
    %444 = vst [vmem:[#allocation7 + $0x20] sm:$0xf] %v412
    %445 = vst [vmem:[#allocation7 + $0x24] sm:$0xf] %v413
    %446 = vst [vmem:[#allocation7 + $0x28] sm:$0xf] %v414
    %447 = vst [vmem:[#allocation7 + $0x2c] sm:$0xf] %v415
    %448 = vst [vmem:[#allocation7 + $0x30] sm:$0xf] %v416
    %449 = vst [vmem:[#allocation7 + $0x34] sm:$0xf] %v417
    %450 = vst [vmem:[#allocation7 + $0x38] sm:$0xf] %v418
    %451 = vst [vmem:[#allocation7 + $0x3c] sm:$0xf] %v419
    // Predicated region
    $region22: #{tpu_custom_call.1} parent=1 // pred_check
      _
    $region23: #{tpu_custom_call.1} parent=1 // pred_check_branch
      %453 = sbr.rel (0) target = $region25
    $region24: #{tpu_custom_call.1} parent=1 // pred_region
      %s455 = ssub.s32 1024, 1024
      %456 = vsyncadd [#allocation4], %s455
      %s457 = sshll.u32 [#allocation7], 4
      %s458 = int_to_ptr.vmem [resolvable:$true] %s457
      %463 = dma.vmem_to_hbm [thread:$0]  %s458, 1024, %s3, [#allocation4], 64, 64, 4
    $region25: #{tpu_custom_call.1} parent=1 // pred_fallthru
      _
    // Predicated region
    $region26: #{tpu_custom_call.1} parent=1 // pred_check
      _
    $region27: #{tpu_custom_call.1} parent=1 // pred_check_branch
      %465 = sbr.rel (0) target = $region29
    $region28: #{tpu_custom_call.1} parent=1 // pred_region
      %466 = dma.done [#allocation4], 1024
    $region29: #{tpu_custom_call.1} parent=1 // pred_fallthru
      _
    %467 = vsyncpa [#allocation3], 1
    %468 = vsyncpa [#allocation6], 1
    %469 = vsyncpa [#allocation4], 1

</llo_original>
